<compile_context>
chip_gen: v7x
topology: tpu7x:2x2x1
jax: 0.10.0
libtpu: 0.0.40
codegen_flags: <defaults>
</compile_context>

<pallas_src>
import functools

import jax
import jax.numpy as jnp
from jax import lax
from jax.experimental import pallas as pl
from jax.experimental.pallas import tpu as pltpu

_LANE = 128
_SUBLANE = 8
_MAX_ROW_TILE = 2048          # (2048,128) f32 block = 1 MiB; 2 in x 2 bufs = 4 MiB VMEM
_LOG_CLAMP = -100.0           # PyTorch BCELoss clamps each log term at -100


def _round_up(x, m):
    return ((x + m - 1) // m) * m


def _bce_kernel(pred_ref, tgt_ref, out_ref, acc_ref, *, tm, n_elem, inv_n):
    i = pl.program_id(0)

    @pl.when(i == 0)
    def _():
        acc_ref[...] = jnp.zeros_like(acc_ref)

    p = pred_ref[...].astype(jnp.float32)
    t = tgt_ref[...].astype(jnp.float32)

    log_p = jnp.maximum(jnp.log(p), _LOG_CLAMP)
    log_1mp = jnp.maximum(jnp.log(1.0 - p), _LOG_CLAMP)
    elem_loss = -(t * log_p + (1.0 - t) * log_1mp)

    # Mask out padding / out-of-bounds garbage (partial last block) by global
    # element index.  jnp.where is a select, so NaN/Inf produced by log() of
    # garbage lanes cannot leak into the sum.
    row_ids = lax.broadcasted_iota(jnp.int32, (tm, _LANE), 0)
    lane_ids = lax.broadcasted_iota(jnp.int32, (tm, _LANE), 1)
    elem_idx = (i * tm + row_ids) * _LANE + lane_ids
    elem_loss = jnp.where(elem_idx < n_elem, elem_loss, 0.0)

    # Lane/sublane-dense accumulation: fold (tm,128) into an (8,128) partial
    # sum (pure vreg adds, no cross-lane work per iteration).
    acc_ref[...] += elem_loss.reshape(tm // _SUBLANE, _SUBLANE, _LANE).sum(axis=0)

    @pl.when(i == pl.num_programs(0) - 1)
    def _():
        # Single cross-lane/sublane reduction + mean, done once.
        out_ref[...] = (jnp.sum(acc_ref[...]) * inv_n).reshape(1, 1)


def binary_segmentation_loss(ypred, ytgt):
    """BCELoss(ypred, ytgt) with mean reduction, computed in a Pallas kernel."""
    assert ypred.shape == ytgt.shape
    n_elem = ypred.size
    assert n_elem > 0

    p_flat = jnp.ravel(ypred)
    t_flat = jnp.ravel(ytgt)

    # Pad only to a lane multiple (128).  For typical NCHW probability maps
    # n_elem % 128 == 0, so this branch (and its HBM copy) never triggers and
    # ravel/reshape stay pure layout no-ops.  Pad values are masked in-kernel.
    padded = _round_up(n_elem, _LANE)
    pad = padded - n_elem
    if pad:
        p_flat = jnp.pad(p_flat, (0, pad))
        t_flat = jnp.pad(t_flat, (0, pad))

    rows = padded // _LANE
    p2d = p_flat.reshape(rows, _LANE)
    t2d = t_flat.reshape(rows, _LANE)

    if rows < _SUBLANE:
        # Tiny inputs only: make the single block (8,128)-aligned.
        extra = _SUBLANE - rows
        p2d = jnp.pad(p2d, ((0, extra), (0, 0)))
        t2d = jnp.pad(t2d, ((0, extra), (0, 0)))
        rows = _SUBLANE

    # Row tile: multiple of 8, never larger than the array; last block may be
    # partial (masked in-kernel).
    tm = min(_MAX_ROW_TILE, (rows // _SUBLANE) * _SUBLANE)
    grid = (pl.cdiv(rows, tm),)

    kernel = functools.partial(
        _bce_kernel, tm=tm, n_elem=n_elem, inv_n=1.0 / float(n_elem))

    out = pl.pallas_call(
        kernel,
        out_shape=jax.ShapeDtypeStruct((1, 1), jnp.float32),
        grid_spec=pltpu.PrefetchScalarGridSpec(
            num_scalar_prefetch=0,
            grid=grid,
            in_specs=[
                pl.BlockSpec((tm, _LANE), lambda i: (i, 0)),
                pl.BlockSpec((tm, _LANE), lambda i: (i, 0)),
            ],
            out_specs=pl.BlockSpec((1, 1), lambda i: (0, 0)),
            scratch_shapes=[pltpu.VMEM((_SUBLANE, _LANE), jnp.float32)],
        ),
        compiler_params=pltpu.CompilerParams(
            dimension_semantics=("arbitrary",),
        ),
    )(p2d, t2d)
    return out[0, 0]


def _reference_bce(ypred, ytgt):
    p = ypred.astype(jnp.float32)
    t = ytgt.astype(jnp.float32)
    log_p = jnp.maximum(jnp.log(p), _LOG_CLAMP)
    log_1mp = jnp.maximum(jnp.log(1.0 - p), _LOG_CLAMP)
    return jnp.mean(-(t * log_p + (1.0 - t) * log_1mp))


if __name__ == "__main__":
    key = jax.random.PRNGKey(0)
    k1, k2 = jax.random.split(key)

    B, C, H, W = 2, 4, 16, 16
    logits = jax.random.normal(k1, (B, C, H, W), dtype=jnp.float32)
    ypred = jax.nn.sigmoid(logits)  # probabilities in (0,1), as BCELoss expects
    ytgt = (jax.random.uniform(k2, (B, C, H, W)) > 0.5).astype(jnp.float32)

    loss = binary_segmentation_loss(ypred, ytgt)
    jax.block_until_ready(loss)

    ref = _reference_bce(ypred, ytgt)
    assert jnp.allclose(loss, ref, atol=1e-5, rtol=1e-5), (loss, ref)

    print("KERNEL_OK")
</pallas_src>

<mosaic_0001>
module attributes {stable_mosaic.version = 11 : i64} {
  func.func @_bce_kernel(%arg0: i32, %arg1: memref<16x128xf32, #tpu.memory_space<vmem>>, %arg2: memref<16x128xf32, #tpu.memory_space<vmem>>, %arg3: memref<1x1xf32, #tpu.memory_space<vmem>>, %arg4: memref<8x128xf32, #tpu.memory_space<vmem>>) attributes {dimension_semantics = [#tpu.dimension_semantics<arbitrary>], iteration_bounds = array<i64: 1>, scalar_prefetch = 0 : i64, scratch_operands = 1 : i64, tpu.core_type = #tpu.core_type<tc>, window_params = [{transform_indices = @transform_0, window_bounds = array<i64: 16, 128>}, {transform_indices = @transform_1, window_bounds = array<i64: 16, 128>}, {pipeline_mode = #tpu.pipeline_mode<synchronous>, transform_indices = @transform_2, window_bounds = array<i64: 1, 1>}]} {
    %c0_i32 = arith.constant 0 : i32
    %0 = arith.cmpi eq, %arg0, %c0_i32 : i32
    %1 = arith.extui %0 : i1 to i32
    %c0_i32_0 = arith.constant 0 : i32
    %2 = arith.cmpi ne, %1, %c0_i32_0 : i32
    scf.if %2 {
      %cst_16 = arith.constant 0.000000e+00 : f32
      %40 = vector.broadcast %cst_16 : f32 to vector<8x128xf32>
      %c0_17 = arith.constant 0 : index
      %c0_18 = arith.constant 0 : index
      %41 = vector.load %arg4[%c0_17, %c0_18] : memref<8x128xf32, #tpu.memory_space<vmem>>, vector<8x128xf32>
      tpu.vector_store %arg4[%c0_17, %c0_18], %40 {strides = array<i32>} : memref<8x128xf32, #tpu.memory_space<vmem>>, vector<8x128xf32>,
    } else {
    }
    %c0 = arith.constant 0 : index
    %c0_1 = arith.constant 0 : index
    %3 = vector.load %arg1[%c0, %c0_1] : memref<16x128xf32, #tpu.memory_space<vmem>>, vector<16x128xf32>
    %c0_2 = arith.constant 0 : index
    %c0_3 = arith.constant 0 : index
    %4 = vector.load %arg2[%c0_2, %c0_3] : memref<16x128xf32, #tpu.memory_space<vmem>>, vector<16x128xf32>
    %5 = math.log %3 : vector<16x128xf32>
    %cst = arith.constant -1.000000e+02 : f32
    %6 = vector.broadcast %cst : f32 to vector<16x128xf32>
    %7 = arith.maximumf %5, %6 : vector<16x128xf32>
    %cst_4 = arith.constant 1.000000e+00 : f32
    %8 = vector.broadcast %cst_4 : f32 to vector<16x128xf32>
    %9 = arith.subf %8, %3 : vector<16x128xf32>
    %10 = math.log %9 : vector<16x128xf32>
    %cst_5 = arith.constant -1.000000e+02 : f32
    %11 = vector.broadcast %cst_5 : f32 to vector<16x128xf32>
    %12 = arith.maximumf %10, %11 : vector<16x128xf32>
    %13 = arith.mulf %4, %7 : vector<16x128xf32>
    %cst_6 = arith.constant 1.000000e+00 : f32
    %14 = vector.broadcast %cst_6 : f32 to vector<16x128xf32>
    %15 = arith.subf %14, %4 : vector<16x128xf32>
    %16 = arith.mulf %15, %12 : vector<16x128xf32>
    %17 = arith.addf %13, %16 : vector<16x128xf32>
    %cst_7 = arith.constant 0.000000e+00 : f32
    %18 = vector.broadcast %cst_7 : f32 to vector<16x128xf32>
    %19 = arith.subf %18, %17 : vector<16x128xf32>
    %20 = tpu.iota {dimensions = array<i32: 0>} : vector<16x128xi32>
    %21 = tpu.iota {dimensions = array<i32: 1>} : vector<16x128xi32>
    %c16_i32 = arith.constant 16 : i32
    %22 = arith.muli %arg0, %c16_i32 : i32
    %23 = vector.broadcast %22 : i32 to vector<16x128xi32>
    %24 = arith.addi %23, %20 : vector<16x128xi32>
    %c128_i32 = arith.constant 128 : i32
    %25 = vector.broadcast %c128_i32 : i32 to vector<16x128xi32>
    %26 = arith.muli %24, %25 : vector<16x128xi32>
    %27 = arith.addi %26, %21 : vector<16x128xi32>
    %c2048_i32 = arith.constant 2048 : i32
    %28 = vector.broadcast %c2048_i32 : i32 to vector<16x128xi32>
    %29 = arith.cmpi slt, %27, %28 : vector<16x128xi32>
    %cst_8 = arith.constant 0.000000e+00 : f32
    %30 = vector.broadcast %cst_8 : f32 to vector<16x128xf32>
    %31 = arith.select %29, %19, %30 : vector<16x128xi1>, vector<16x128xf32>
    %c0_9 = arith.constant 0 : index
    %c0_10 = arith.constant 0 : index
    %32 = vector.load %arg4[%c0_9, %c0_10] : memref<8x128xf32, #tpu.memory_space<vmem>>, vector<8x128xf32>
    %33 = vector.shape_cast %31 : vector<16x128xf32> to vector<2x8x128xf32>
    %cst_11 = arith.constant dense<0.000000e+00> : vector<8x128xf32>
    %34 = vector.multi_reduction <add>, %33, %cst_11 [0] : vector<2x8x128xf32> to vector<8x128xf32>
    %35 = arith.addf %32, %34 : vector<8x128xf32>
    %c0_12 = arith.constant 0 : index
    %c0_13 = arith.constant 0 : index
    %36 = vector.load %arg4[%c0_12, %c0_13] : memref<8x128xf32, #tpu.memory_space<vmem>>, vector<8x128xf32>
    tpu.vector_store %arg4[%c0_12, %c0_13], %35 {strides = array<i32>} : memref<8x128xf32, #tpu.memory_space<vmem>>, vector<8x128xf32>,
    %c0_i32_14 = arith.constant 0 : i32
    %37 = arith.cmpi eq, %arg0, %c0_i32_14 : i32
    %38 = arith.extui %37 : i1 to i32
    %c0_i32_15 = arith.constant 0 : i32
    %39 = arith.cmpi ne, %38, %c0_i32_15 : i32
    scf.if %39 {
      %c0_16 = arith.constant 0 : index
      %c0_17 = arith.constant 0 : index
      %40 = vector.load %arg4[%c0_16, %c0_17] : memref<8x128xf32, #tpu.memory_space<vmem>>, vector<8x128xf32>
      %41 = vector.shape_cast %40 : vector<8x128xf32> to vector<1x8x128xf32>
      %cst_18 = arith.constant dense<0.000000e+00> : vector<1xf32>
      %42 = vector.multi_reduction <add>, %41, %cst_18 [1, 2] : vector<1x8x128xf32> to vector<1xf32>
      %43 = vector.shape_cast %42 : vector<1xf32> to vector<1x1x1xf32>
      %44 = vector.extract %43[0, 0, 0] : f32 from vector<1x1x1xf32>
      %cst_19 = arith.constant 4.8828125E-4 : f32
      %45 = arith.mulf %44, %cst_19 : f32
      %46 = vector.broadcast %45 : f32 to vector<1x1xf32>
      %c0_20 = arith.constant 0 : index
      %c0_21 = arith.constant 0 : index
      %47 = vector.load %arg3[%c0_20, %c0_21] : memref<1x1xf32, #tpu.memory_space<vmem>>, vector<1x1xf32>
      tpu.vector_store %arg3[%c0_20, %c0_21], %46 {strides = array<i32>} : memref<1x1xf32, #tpu.memory_space<vmem>>, vector<1x1xf32>,
    } else {
    }
    return
  }
  func.func @transform_0(%arg0: i32) -> (i32, i32) {
    %c0_i32 = arith.constant 0 : i32
    %c0_i32_0 = arith.constant 0 : i32
    return %arg0, %c0_i32 : i32, i32
  }
  func.func @transform_1(%arg0: i32) -> (i32, i32) {
    %c0_i32 = arith.constant 0 : i32
    %c0_i32_0 = arith.constant 0 : i32
    return %arg0, %c0_i32 : i32, i32
  }
  func.func @transform_2(%arg0: i32) -> (i32, i32) {
    %c0_i32 = arith.constant 0 : i32
    %c0_i32_0 = arith.constant 0 : i32
    %c0_i32_1 = arith.constant 0 : i32
    return %c0_i32, %c0_i32_0 : i32, i32
  }
}

</mosaic_0001>

<llo_original>
// kernel: tpu_custom_call.1
$region0: #{tpu_custom_call.1}
  #allocation0 [shape = 'u32[]', space=smem, size = 0x4, offset = 0x4, fixed_abs, tag = 'smem constant byte address 0x4 - core index']
  #allocation1 [shape = 'u32[144,128]{1,0:T(1,128)}', space=vmem, size = 0x12000, scoped, tag = 'internal scratch']
  #allocation2 [shape = 'f32[8,128]{1,0:T(8,128)}', space=vmem, size = 0x1000, scoped, tag = 'scratch operand']
  %s0 = inlined_call_operand.hbm [shape: f32[16,128], index: 0, kind: input, shape index: {}]
  %s1 = inlined_call_operand.hbm [shape: f32[16,128], index: 1, kind: input, shape index: {}]
  %s2 = inlined_call_operand.hbm [shape: f32[1,1], index: 2, kind: output, shape index: {}]
  %s3 = sld [smem:[#allocation0]]
  $region34: #{tpu_custom_call.1} parent=0
    _
  %s5 = ssub.s32 1, %s3
  %s6 = scalar_select 0, %s5, %s3
  $region1: #{tpu_custom_call.1} parent=0
    #allocation3 [shape = 'u8[8192]{0}', space=vmem, size = 0x2000, scoped, tag = 'input window, operand 0, single buffered']
    #allocation4 [shape = 's32[1]{0}', space=sflag, size = 0x4, scoped, tag = 'scoped memory for tpu_custom_call.1']
    #allocation5 [shape = 's32[1]{0}', space=sflag, size = 0x4, scoped, tag = 'scoped memory for tpu_custom_call.1']
    #allocation6 [shape = 'u8[8192]{0}', space=vmem, size = 0x2000, scoped, tag = 'input window, operand 1, single buffered']
    #allocation7 [shape = 's32[1]{0}', space=sflag, size = 0x4, scoped, tag = 'scoped memory for tpu_custom_call.1']
    #allocation8 [shape = 'u8[512]{0}', space=vmem, size = 0x400, scoped, tag = 'output window, operand 0, single buffered']
    %7 = vsyncpa [#allocation4], 0
    %8 = vsyncpa [#allocation7], 0
    %9 = vsyncpa [#allocation5], 0
    // Predicated region
    $region2: #{tpu_custom_call.1} parent=1 // pred_check
      _
    $region3: #{tpu_custom_call.1} parent=1 // pred_check_branch
      %11 = sbr.rel (0) target = $region5
    $region4: #{tpu_custom_call.1} parent=1 // pred_region
      %s13 = ssub.s32 256, 256
      %14 = vsyncadd [#allocation4], %s13
      %s15 = sshll.u32 [#allocation3], 4
      %s16 = int_to_ptr.vmem [resolvable:$true] %s15
      %21 = dma.hbm_to_vmem [thread:$0]  %s0, 256, %s16, [#allocation4], 128, 128, 8
    $region5: #{tpu_custom_call.1} parent=1 // pred_fallthru
      _
    // Predicated region
    $region6: #{tpu_custom_call.1} parent=1 // pred_check
      _
    $region7: #{tpu_custom_call.1} parent=1 // pred_check_branch
      %23 = sbr.rel (0) target = $region9
    $region8: #{tpu_custom_call.1} parent=1 // pred_region
      %s25 = ssub.s32 256, 256
      %26 = vsyncadd [#allocation7], %s25
      %s27 = sshll.u32 [#allocation6], 4
      %s28 = int_to_ptr.vmem [resolvable:$true] %s27
      %33 = dma.hbm_to_vmem [thread:$0]  %s1, 256, %s28, [#allocation7], 128, 128, 8
    $region9: #{tpu_custom_call.1} parent=1 // pred_fallthru
      _
    // Predicated region
    $region10: #{tpu_custom_call.1} parent=1 // pred_check
      _
    $region11: #{tpu_custom_call.1} parent=1 // pred_check_branch
      %35 = sbr.rel (0) target = $region13
    $region12: #{tpu_custom_call.1} parent=1 // pred_region
      %36 = dma.done [#allocation4], 256
    $region13: #{tpu_custom_call.1} parent=1 // pred_fallthru
      _
    // Predicated region
    $region14: #{tpu_custom_call.1} parent=1 // pred_check
      _
    $region15: #{tpu_custom_call.1} parent=1 // pred_check_branch
      %38 = sbr.rel (0) target = $region17
    $region16: #{tpu_custom_call.1} parent=1 // pred_region
      %39 = dma.done [#allocation7], 256
    $region17: #{tpu_custom_call.1} parent=1 // pred_fallthru
      _
    %p40 = scmp.eq.s32.totalorder 0, 0
    // Predicated region
    $region18: #{tpu_custom_call.1} parent=1 // pred_check
      %p41 = pneg %p40
    $region19: #{tpu_custom_call.1} parent=1 // pred_check_branch
      %43 = sbr.rel (%p41) target = $region21
    $region20: #{tpu_custom_call.1} parent=1 // pred_region
      %44 = vst [vmem:[#allocation2] sm:$0xff] 0.0
    $region21: #{tpu_custom_call.1} parent=1 // pred_fallthru
      _
    %v45 = vld [vmem:[#allocation3] sm:$0xff]
    %v46 = vld [vmem:[#allocation3 + $0x8] sm:$0xff]
    %v47 = vld [vmem:[#allocation6] sm:$0xff]
    %v48 = vld [vmem:[#allocation6 + $0x8] sm:$0xff]
    %v49 = vlog2.pop %v45
    %v50 = vmul.f32 %v49, 0.6931472
    %v51 = vlog2.pop %v46
    %v52 = vmul.f32 %v51, 0.6931472
    %v53 = vmax.f32 %v50, -100.0
    %v54 = vmax.f32 %v52, -100.0
    %v55 = vsub.f32 1.0, %v45
    %v56 = vsub.f32 1.0, %v46
    %v57 = vlog2.pop %v55
    %v58 = vmul.f32 %v57, 0.6931472
    %v59 = vlog2.pop %v56
    %v60 = vmul.f32 %v59, 0.6931472
    %v61 = vmax.f32 %v58, -100.0
    %v62 = vmax.f32 %v60, -100.0
    %v63 = vmul.f32 %v47, %v53
    %v64 = vmul.f32 %v48, %v54
    %v65 = vsub.f32 1.0, %v47
    %v66 = vsub.f32 1.0, %v48
    %v67 = vmul.f32 %v65, %v61
    %v68 = vmul.f32 %v66, %v62
    %v69 = vadd.f32 %v63, %v67
    %v70 = vadd.f32 %v64, %v68
    %v71 = vsub.f32 0.0, %v69
    %v72 = vsub.f32 0.0, %v70
    %v73 = vlaneseq
    %v74 = vshrl.u32 %v73, 7
    %v75 = vadd.s32 %v74, 8
    %v76 = vlaneseq
    %v77 = vand.u32 %v76, 127
    %s78 = smul.u32 0, 16
    %v79 = vstv %s78
    %v80 = vadd.s32 %v79, %v74
    %v81 = vadd.s32 %v79, %v75
    %v82 = vmul.u32 %v80, 128
    %v83 = vmul.u32 %v81, 128
    %v84 = vadd.s32 %v82, %v77
    %v85 = vadd.s32 %v83, %v77
    %vm86 = vcmp.lt.s32.totalorder %v84, 2048
    %vm87 = vcmp.lt.s32.totalorder %v85, 2048
    %v88 = vsel %vm86, %v71, 0.0
    %v89 = vsel %vm87, %v72, 0.0
    %v90 = vld [vmem:[#allocation2] sm:$0xff]
    %v91 = vadd.f32 %v88, %v89
    %v92 = vadd.f32 %v90, %v91
    %93 = vst [vmem:[#allocation2] sm:$0xff] %v92
    // Predicated region
    $region22: #{tpu_custom_call.1} parent=1 // pred_check
      %p94 = pneg %p40
    $region23: #{tpu_custom_call.1} parent=1 // pred_check_branch
      %96 = sbr.rel (%p94) target = $region25
    $region24: #{tpu_custom_call.1} parent=1 // pred_region
      %v97 = vld [vmem:[#allocation2] sm:$0xff]
      %98 = vadd.xlane.f32.xlu0 %v97
      %v99 = vpop.xlane.xlu0 %98
      %v100 = vrot.slane %v99, 4
      %v101 = vadd.f32 %v99, %v100
      %v102 = vrot.slane %v101, 2
      %v103 = vadd.f32 %v101, %v102
      %v104 = vrot.slane %v103, 1
      %v105 = vadd.f32 %v103, %v104
      %s106 = vtos %v105
      %s107 = smul.f32 %s106, 0.00048828125
      %v108 = vstv %s107
      %vm109 = vcmask 0
      %110 = vst.msk [vmem:[#allocation8] sm:$0x1] %vm109, %v108
    $region25: #{tpu_custom_call.1} parent=1 // pred_fallthru
      _
    // Predicated region
    $region26: #{tpu_custom_call.1} parent=1 // pred_check
      _
    $region27: #{tpu_custom_call.1} parent=1 // pred_check_branch
      %112 = sbr.rel (0) target = $region29
    $region28: #{tpu_custom_call.1} parent=1 // pred_region
      %s114 = ssub.s32 16, 16
      %115 = vsyncadd [#allocation5], %s114
      %s117 = sshll.u32 [#allocation8], 4
      %s118 = int_to_ptr.vmem [resolvable:$true] %s117
      %120 = dma.vmem_to_hbm [thread:$0]  %s118, 16, %s2, [#allocation5]
    $region29: #{tpu_custom_call.1} parent=1 // pred_fallthru
      _
    // Predicated region
    $region30: #{tpu_custom_call.1} parent=1 // pred_check
      _
    $region31: #{tpu_custom_call.1} parent=1 // pred_check_branch
      %122 = sbr.rel (0) target = $region33
    $region32: #{tpu_custom_call.1} parent=1 // pred_region
      %123 = dma.done [#allocation5], 16
    $region33: #{tpu_custom_call.1} parent=1 // pred_fallthru
      _
    %124 = vsyncpa [#allocation4], 1
    %125 = vsyncpa [#allocation7], 1
    %126 = vsyncpa [#allocation5], 1

</llo_original>
